<compile_context>
chip_gen: v5e
topology: v5e:2x2
jax: 0.10.0
libtpu: 0.0.40
codegen_flags: <defaults>
</compile_context>

<pallas_src>
import functools

import jax
import jax.numpy as jnp
from jax.experimental import pallas as pl
from jax.experimental.pallas import tpu as pltpu


def _round_up(n, m):
    return ((n + m - 1) // m) * m


def _vmem_capacity_bytes():
    """Physical per-core VMEM; conservative 64 MiB (v7x) fallback."""
    try:
        cap = getattr(pltpu.get_tpu_info(), "vmem_capacity_bytes", None)
        if cap:
            return int(cap)
    except Exception:
        pass
    return 64 << 20


def _coupling_kernel(*refs, num_mid, reverse):
    """out = b (+/-) MLP(a) for one (TB, half_pad) batch tile.

    refs (num_mid > 0):
      a, b, w_in, bias_in, w_mid, bias_mid, w_end, bias_end, out
    refs (num_mid == 0):
      a, b, w_in, bias_in, w_end, bias_end, out
    Weights stay VMEM-resident across the whole batch grid; MXU inputs are in
    the weight dtype (bf16 fast path), accumulation is always f32.
    """
    if num_mid > 0:
        (a_ref, b_ref, w_in_ref, bias_in_ref, w_mid_ref, bias_mid_ref,
         w_end_ref, bias_end_ref, out_ref) = refs
    else:
        (a_ref, b_ref, w_in_ref, bias_in_ref,
         w_end_ref, bias_end_ref, out_ref) = refs
        w_mid_ref = bias_mid_ref = None

    w_dtype = w_in_ref.dtype
    a = a_ref[...].astype(w_dtype)

    # in_block: Linear + ReLU (MXU matmul, f32 accumulation)
    h = jnp.dot(a, w_in_ref[...], preferred_element_type=jnp.float32)
    h = jnp.maximum(h + bias_in_ref[...], 0.0)

    # mid_block: exactly num_mid x (Linear + ReLU); statically unrolled
    for i in range(num_mid):
        h = jnp.dot(h.astype(w_dtype), w_mid_ref[i],
                    preferred_element_type=jnp.float32)
        h = jnp.maximum(h + bias_mid_ref[i], 0.0)

    # end_block: Linear (no activation)
    shift = jnp.dot(h.astype(w_dtype), w_end_ref[...],
                    preferred_element_type=jnp.float32)
    shift = shift + bias_end_ref[...]

    # additive coupling; `reverse` is a trace-time constant (no sign multiply)
    b = b_ref[...].astype(jnp.float32)
    out = b - shift if reverse else b + shift
    out_ref[...] = out.astype(out_ref.dtype)


def coupling_forward(x, padded_params, num_mid, mask_config, reverse, *,
                     tb=None):
    """Pallas implementation of Coupling.forward.  x: (B, W) -> (B, W)."""
    B, W = x.shape
    half = W // 2

    w_in, bias_in, w_mid, bias_mid, w_end, bias_end = padded_params
    half_pad, mid_pad = w_in.shape
    has_mid = num_mid > 0

    # even/odd de-interleave (glue; the single-layer API is (B, W)).
    # TODO(synk): when stacking NICE coupling layers, keep x split as (a, b)
    # planes between layers so this stride-2 gather/scatter disappears.
    x3 = x.reshape(B, half, 2)
    if mask_config == 0:
        a, b = x3[:, :, 0], x3[:, :, 1]
    else:
        b, a = x3[:, :, 0], x3[:, :, 1]

    # Column pad only (padded input lanes meet zero weight rows => exact).
    # The batch axis stays ragged: Pallas masks the last partial block's
    # writes, and rows are independent so garbage rows cannot contaminate.
    if half_pad != half:
        a_in = jnp.pad(a, ((0, 0), (0, half_pad - half)))
        b_in = jnp.pad(b, ((0, 0), (0, half_pad - half)))
    else:
        a_in, b_in = a, b

    weight_args = ([w_in, bias_in]
                   + ([w_mid, bias_mid] if has_mid else [])
                   + [w_end, bias_end])
    weight_bytes = sum(int(p.size) * jnp.dtype(p.dtype).itemsize
                       for p in weight_args)

    act_item = jnp.dtype(x.dtype).itemsize
    vmem_cap = _vmem_capacity_bytes()
    vmem_budget = (vmem_cap * 3) // 4      # headroom for Mosaic's own scratch

    # Batch tile: multiple of 8 sublanes; larger on 128 MiB parts (v5e/v6e),
    # <= 256 on v7x (64 MiB VMEM).
    if tb is None:
        tb = 512 if vmem_cap >= (100 << 20) else 256
    tb = min(tb, _round_up(B, 8))
    # Ensure >= 2 grid steps when possible so "parallel" can shard across TCs.
    if B > 8 and pl.cdiv(B, tb) < 2:
        tb = max(8, _round_up(pl.cdiv(B, 2), 8))

    def _act_bytes(t):
        # a, b, out tiles (double-buffered) + f32 h / matmul intermediates.
        return 3 * 2 * t * half_pad * act_item + 2 * t * mid_pad * 4

    while tb > 8 and weight_bytes + _act_bytes(tb) + (4 << 20) > vmem_budget:
        tb = max(8, tb // 2)
    # TODO(synk): if resident weights alone exceed the budget (huge mid_dim on
    # v7x), stream w_mid[i] per layer with pltpu.emit_pipeline instead.

    grid = (pl.cdiv(B, tb),)
    vmem_limit = int(min(max(weight_bytes + _act_bytes(tb) + (4 << 20),
                             32 << 20), vmem_budget))

    kernel = functools.partial(_coupling_kernel, num_mid=int(num_mid),
                               reverse=bool(reverse))

    def run(single_buffer_weights):
        kw = ({"pipeline_mode": pl.Buffered(buffer_count=1)}
              if single_buffer_weights else {})

        def wspec(arr):
            nd = arr.ndim
            return pl.BlockSpec(arr.shape, lambda i, _nd=nd: (0,) * _nd, **kw)

        act_spec = pl.BlockSpec((tb, half_pad), lambda i: (i, 0))
        in_specs = [act_spec, act_spec, wspec(w_in), wspec(bias_in)]
        args = [a_in, b_in, w_in, bias_in]
        if has_mid:
            in_specs += [wspec(w_mid), wspec(bias_mid)]
            args += [w_mid, bias_mid]
        in_specs += [wspec(w_end), wspec(bias_end)]
        args += [w_end, bias_end]

        return pl.pallas_call(
            kernel,
            out_shape=jax.ShapeDtypeStruct((B, half_pad), x.dtype),
            grid=grid,
            in_specs=in_specs,
            out_specs=act_spec,
            # b (input 1) aliases the output: no extra HBM allocation / copy.
            input_output_aliases={1: 0},
            compiler_params=pltpu.CompilerParams(
                dimension_semantics=("parallel",),
                vmem_limit_bytes=vmem_limit),
        )(*args)

    try:
        b_new = run(True)
    except Exception:
        # Fallback if this Pallas build rejects Buffered(1) for inputs.
        b_new = run(False)

    b_new = b_new[:, :half]

    # re-interleave (glue, plain JAX)
    if mask_config == 0:
        out = jnp.stack((a, b_new), axis=2)
    else:
        out = jnp.stack((b_new, a), axis=2)
    return out.reshape(B, W)


def init_coupling_params(key, in_out_dim, mid_dim, hidden):
    """Deterministic nn.Linear-style init matching the PyTorch module shapes."""
    half = in_out_dim // 2
    num_mid = hidden - 1
    ks = jax.random.split(key, 3)

    def lin(k, fan_in, fan_out):
        bound = 1.0 / float(fan_in) ** 0.5
        kw, kb = jax.random.split(k)
        w = jax.random.uniform(kw, (fan_in, fan_out), jnp.float32, -bound, bound)
        b = jax.random.uniform(kb, (1, fan_out), jnp.float32, -bound, bound)
        return w, b

    w_in, bias_in = lin(ks[0], half, mid_dim)
    mid_ws, mid_bs = [], []
    mid_keys = jax.random.split(ks[1], max(num_mid, 1))
    for i in range(num_mid):
        w, bb = lin(mid_keys[i], mid_dim, mid_dim)
        mid_ws.append(w)
        mid_bs.append(bb)
    if num_mid > 0:
        w_mid = jnp.stack(mid_ws, axis=0)          # (num_mid, mid, mid)
        bias_mid = jnp.stack(mid_bs, axis=0)       # (num_mid, 1, mid)
    else:
        w_mid = jnp.zeros((0, mid_dim, mid_dim), jnp.float32)
        bias_mid = jnp.zeros((0, 1, mid_dim), jnp.float32)
    w_end, bias_end = lin(ks[2], mid_dim, half)
    return (w_in, bias_in, w_mid, bias_mid, w_end, bias_end)


def pad_coupling_params(params, param_dtype=jnp.float32):
    """Zero-pad dims to 128 multiples (lane-dense / full MXU tiles).

    param_dtype=jnp.bfloat16 stores the weight matrices in bf16 (full-rate MXU
    on v5e/v6e/v7x, half the resident VMEM / HBM traffic); biases stay f32 and
    accumulation is always f32.  Returns (padded_params, num_mid).
    """
    w_in, bias_in, w_mid, bias_mid, w_end, bias_end = params
    half, mid = w_in.shape
    num_mid = w_mid.shape[0]
    half_pad = _round_up(half, 128)
    mid_pad = _round_up(mid, 128)

    def pad2(m, r, c):
        return jnp.pad(m, ((0, r - m.shape[0]), (0, c - m.shape[1])))

    w_in_p = pad2(w_in, half_pad, mid_pad).astype(param_dtype)
    bias_in_p = pad2(bias_in, 1, mid_pad)
    if num_mid > 0:
        w_mid_p = jnp.pad(
            w_mid, ((0, 0), (0, mid_pad - mid), (0, mid_pad - mid))
        ).astype(param_dtype)
        bias_mid_p = jnp.pad(bias_mid, ((0, 0), (0, 0), (0, mid_pad - mid)))
    else:
        # hidden == 1: no mid layers; these zero-sized arrays are never passed
        # to the kernel (coupling_forward drops them from args/in_specs).
        w_mid_p = jnp.zeros((0, mid_pad, mid_pad), param_dtype)
        bias_mid_p = jnp.zeros((0, 1, mid_pad), jnp.float32)
    w_end_p = pad2(w_end, mid_pad, half_pad).astype(param_dtype)
    bias_end_p = pad2(bias_end, 1, half_pad)
    return (w_in_p, bias_in_p, w_mid_p, bias_mid_p, w_end_p, bias_end_p), num_mid


def coupling_reference(x, params, mask_config, reverse):
    """Pure-JAX reference (unpadded, f32) for correctness checking."""
    B, W = x.shape
    half = W // 2
    x3 = x.reshape(B, half, 2)
    if mask_config == 0:
        a, b = x3[:, :, 0], x3[:, :, 1]
    else:
        b, a = x3[:, :, 0], x3[:, :, 1]
    w_in, bias_in, w_mid, bias_mid, w_end, bias_end = params
    h = jnp.maximum(a @ w_in + bias_in, 0.0)
    for i in range(w_mid.shape[0]):
        h = jnp.maximum(h @ w_mid[i] + bias_mid[i], 0.0)
    shift = h @ w_end + bias_end
    b_new = b - shift if reverse else b + shift
    if mask_config == 0:
        out = jnp.stack((a, b_new), axis=2)
    else:
        out = jnp.stack((b_new, a), axis=2)
    return out.reshape(B, W)


if __name__ == "__main__":
    key = jax.random.PRNGKey(0)
    ok = True

    configs = [
        # (B, in_out_dim, mid_dim, hidden, mask_config, reverse, param_dtype, tol)
        (8,  16, 32, 3, 0, False, jnp.float32,  1e-4),
        (8,  16, 32, 3, 1, True,  jnp.float32,  1e-4),
        (10,  8, 24, 1, 0, False, jnp.float32,  1e-4),  # hidden=1; ragged batch
        (64, 16, 32, 3, 0, False, jnp.bfloat16, 5e-2),  # bf16 fast path
        (10,  8, 24, 1, 1, True,  jnp.bfloat16, 5e-2),  # bf16 + ragged batch
    ]
    for idx, (B, iod, mid, hidden, mask_config, reverse, pdt, tol) in \
            enumerate(configs):
        k_x, k_p = jax.random.split(jax.random.fold_in(key, idx))
        x = jax.random.normal(k_x, (B, iod), jnp.float32)
        params = init_coupling_params(k_p, iod, mid, hidden)
        padded_params, num_mid = pad_coupling_params(params, param_dtype=pdt)

        out = coupling_forward(x, padded_params, num_mid, mask_config, reverse)
        out = jax.block_until_ready(out)

        ref = coupling_reference(x, params, mask_config, reverse)
        if not jnp.allclose(out, ref, atol=tol, rtol=tol):
            ok = False
            print("mismatch in config", idx,
                  "max err", float(jnp.max(jnp.abs(out - ref))))

    if ok:
        print("KERNEL_OK")
</pallas_src>

<mosaic_0001>
module attributes {stable_mosaic.version = 11 : i64} {
  func.func @_coupling_kernel(%arg0: i32, %arg1: memref<8x128xf32, #tpu.memory_space<vmem>>, %arg2: memref<8x128xf32, #tpu.memory_space<vmem>>, %arg3: memref<128x128xf32, #tpu.memory_space<vmem>>, %arg4: memref<1x128xf32, #tpu.memory_space<vmem>>, %arg5: memref<2x128x128xf32, #tpu.memory_space<vmem>>, %arg6: memref<2x1x128xf32, #tpu.memory_space<vmem>>, %arg7: memref<128x128xf32, #tpu.memory_space<vmem>>, %arg8: memref<1x128xf32, #tpu.memory_space<vmem>>, %arg9: memref<8x128xf32, #tpu.memory_space<vmem>>) attributes {dimension_semantics = [#tpu.dimension_semantics<parallel>], iteration_bounds = array<i64: 1>, scalar_prefetch = 0 : i64, scratch_operands = 0 : i64, tpu.core_type = #tpu.core_type<tc>, window_params = [{transform_indices = @transform_0, window_bounds = array<i64: 8, 128>}, {transform_indices = @transform_1, window_bounds = array<i64: 8, 128>}, {pipeline_mode = #tpu.pipeline_mode<synchronous>, transform_indices = @transform_2, window_bounds = array<i64: 128, 128>}, {pipeline_mode = #tpu.pipeline_mode<synchronous>, transform_indices = @transform_3, window_bounds = array<i64: 1, 128>}, {pipeline_mode = #tpu.pipeline_mode<synchronous>, transform_indices = @transform_4, window_bounds = array<i64: 2, 128, 128>}, {pipeline_mode = #tpu.pipeline_mode<synchronous>, transform_indices = @transform_5, window_bounds = array<i64: 2, 1, 128>}, {pipeline_mode = #tpu.pipeline_mode<synchronous>, transform_indices = @transform_6, window_bounds = array<i64: 128, 128>}, {pipeline_mode = #tpu.pipeline_mode<synchronous>, transform_indices = @transform_7, window_bounds = array<i64: 1, 128>}, {transform_indices = @transform_8, window_bounds = array<i64: 8, 128>}]} {
    %c0 = arith.constant 0 : index
    %c0_0 = arith.constant 0 : index
    %0 = vector.load %arg1[%c0, %c0_0] : memref<8x128xf32, #tpu.memory_space<vmem>>, vector<8x128xf32>
    %c0_1 = arith.constant 0 : index
    %c0_2 = arith.constant 0 : index
    %1 = vector.load %arg3[%c0_1, %c0_2] : memref<128x128xf32, #tpu.memory_space<vmem>>, vector<128x128xf32>
    %cst = arith.constant dense<0.000000e+00> : vector<8x128xf32>
    %2 = tpu.matmul %0, %1, %cst {dimension_numbers = #tpu.dot_dimension_numbers<[1], [0], [0], [1], [0, 0, 1, 1], [], []>} : vector<8x128xf32>, vector<128x128xf32>, vector<8x128xf32> -> vector<8x128xf32>
    %c0_3 = arith.constant 0 : index
    %c0_4 = arith.constant 0 : index
    %3 = vector.load %arg4[%c0_3, %c0_4] : memref<1x128xf32, #tpu.memory_space<vmem>>, vector<1x128xf32>
    %4 = vector.broadcast %3 : vector<1x128xf32> to vector<8x128xf32>
    %5 = arith.addf %2, %4 : vector<8x128xf32>
    %cst_5 = arith.constant 0.000000e+00 : f32
    %6 = vector.broadcast %cst_5 : f32 to vector<8x128xf32>
    %7 = arith.maximumf %5, %6 : vector<8x128xf32>
    %c0_6 = arith.constant 0 : index
    %c0_7 = arith.constant 0 : index
    %c0_8 = arith.constant 0 : index
    %8 = vector.load %arg5[%c0_6, %c0_7, %c0_8] : memref<2x128x128xf32, #tpu.memory_space<vmem>>, vector<1x128x128xf32>
    %9 = vector.shape_cast %8 : vector<1x128x128xf32> to vector<128x128xf32>
    %cst_9 = arith.constant dense<0.000000e+00> : vector<8x128xf32>
    %10 = tpu.matmul %7, %9, %cst_9 {dimension_numbers = #tpu.dot_dimension_numbers<[1], [0], [0], [1], [0, 0, 1, 1], [], []>} : vector<8x128xf32>, vector<128x128xf32>, vector<8x128xf32> -> vector<8x128xf32>
    %c0_10 = arith.constant 0 : index
    %c0_11 = arith.constant 0 : index
    %c0_12 = arith.constant 0 : index
    %11 = vector.load %arg6[%c0_10, %c0_11, %c0_12] : memref<2x1x128xf32, #tpu.memory_space<vmem>>, vector<1x1x128xf32>
    %12 = vector.shape_cast %11 : vector<1x1x128xf32> to vector<1x128xf32>
    %13 = vector.broadcast %12 : vector<1x128xf32> to vector<8x128xf32>
    %14 = arith.addf %10, %13 : vector<8x128xf32>
    %cst_13 = arith.constant 0.000000e+00 : f32
    %15 = vector.broadcast %cst_13 : f32 to vector<8x128xf32>
    %16 = arith.maximumf %14, %15 : vector<8x128xf32>
    %c1 = arith.constant 1 : index
    %c0_14 = arith.constant 0 : index
    %c0_15 = arith.constant 0 : index
    %17 = vector.load %arg5[%c1, %c0_14, %c0_15] : memref<2x128x128xf32, #tpu.memory_space<vmem>>, vector<1x128x128xf32>
    %18 = vector.shape_cast %17 : vector<1x128x128xf32> to vector<128x128xf32>
    %cst_16 = arith.constant dense<0.000000e+00> : vector<8x128xf32>
    %19 = tpu.matmul %16, %18, %cst_16 {dimension_numbers = #tpu.dot_dimension_numbers<[1], [0], [0], [1], [0, 0, 1, 1], [], []>} : vector<8x128xf32>, vector<128x128xf32>, vector<8x128xf32> -> vector<8x128xf32>
    %c1_17 = arith.constant 1 : index
    %c0_18 = arith.constant 0 : index
    %c0_19 = arith.constant 0 : index
    %20 = vector.load %arg6[%c1_17, %c0_18, %c0_19] : memref<2x1x128xf32, #tpu.memory_space<vmem>>, vector<1x1x128xf32>
    %21 = vector.shape_cast %20 : vector<1x1x128xf32> to vector<1x128xf32>
    %22 = vector.broadcast %21 : vector<1x128xf32> to vector<8x128xf32>
    %23 = arith.addf %19, %22 : vector<8x128xf32>
    %cst_20 = arith.constant 0.000000e+00 : f32
    %24 = vector.broadcast %cst_20 : f32 to vector<8x128xf32>
    %25 = arith.maximumf %23, %24 : vector<8x128xf32>
    %c0_21 = arith.constant 0 : index
    %c0_22 = arith.constant 0 : index
    %26 = vector.load %arg7[%c0_21, %c0_22] : memref<128x128xf32, #tpu.memory_space<vmem>>, vector<128x128xf32>
    %cst_23 = arith.constant dense<0.000000e+00> : vector<8x128xf32>
    %27 = tpu.matmul %25, %26, %cst_23 {dimension_numbers = #tpu.dot_dimension_numbers<[1], [0], [0], [1], [0, 0, 1, 1], [], []>} : vector<8x128xf32>, vector<128x128xf32>, vector<8x128xf32> -> vector<8x128xf32>
    %c0_24 = arith.constant 0 : index
    %c0_25 = arith.constant 0 : index
    %28 = vector.load %arg8[%c0_24, %c0_25] : memref<1x128xf32, #tpu.memory_space<vmem>>, vector<1x128xf32>
    %29 = vector.broadcast %28 : vector<1x128xf32> to vector<8x128xf32>
    %30 = arith.addf %27, %29 : vector<8x128xf32>
    %c0_26 = arith.constant 0 : index
    %c0_27 = arith.constant 0 : index
    %31 = vector.load %arg2[%c0_26, %c0_27] : memref<8x128xf32, #tpu.memory_space<vmem>>, vector<8x128xf32>
    %32 = arith.addf %31, %30 : vector<8x128xf32>
    %c0_28 = arith.constant 0 : index
    %c0_29 = arith.constant 0 : index
    %33 = vector.load %arg9[%c0_28, %c0_29] : memref<8x128xf32, #tpu.memory_space<vmem>>, vector<8x128xf32>
    tpu.vector_store %arg9[%c0_28, %c0_29], %32 {strides = array<i32>} : memref<8x128xf32, #tpu.memory_space<vmem>>, vector<8x128xf32>,
    return
  }
  func.func @transform_0(%arg0: i32) -> (i32, i32) {
    %c0_i32 = arith.constant 0 : i32
    %c0_i32_0 = arith.constant 0 : i32
    return %arg0, %c0_i32 : i32, i32
  }
  func.func @transform_1(%arg0: i32) -> (i32, i32) {
    %c0_i32 = arith.constant 0 : i32
    %c0_i32_0 = arith.constant 0 : i32
    return %arg0, %c0_i32 : i32, i32
  }
  func.func @transform_2(%arg0: i32) -> (i32, i32) {
    %c0_i32 = arith.constant 0 : i32
    %c0_i32_0 = arith.constant 0 : i32
    %c0_i32_1 = arith.constant 0 : i32
    return %c0_i32, %c0_i32_0 : i32, i32
  }
  func.func @transform_3(%arg0: i32) -> (i32, i32) {
    %c0_i32 = arith.constant 0 : i32
    %c0_i32_0 = arith.constant 0 : i32
    %c0_i32_1 = arith.constant 0 : i32
    return %c0_i32, %c0_i32_0 : i32, i32
  }
  func.func @transform_4(%arg0: i32) -> (i32, i32, i32) {
    %c0_i32 = arith.constant 0 : i32
    %c0_i32_0 = arith.constant 0 : i32
    %c0_i32_1 = arith.constant 0 : i32
    %c0_i32_2 = arith.constant 0 : i32
    return %c0_i32, %c0_i32_0, %c0_i32_1 : i32, i32, i32
  }
  func.func @transform_5(%arg0: i32) -> (i32, i32, i32) {
    %c0_i32 = arith.constant 0 : i32
    %c0_i32_0 = arith.constant 0 : i32
    %c0_i32_1 = arith.constant 0 : i32
    %c0_i32_2 = arith.constant 0 : i32
    return %c0_i32, %c0_i32_0, %c0_i32_1 : i32, i32, i32
  }
  func.func @transform_6(%arg0: i32) -> (i32, i32) {
    %c0_i32 = arith.constant 0 : i32
    %c0_i32_0 = arith.constant 0 : i32
    %c0_i32_1 = arith.constant 0 : i32
    return %c0_i32, %c0_i32_0 : i32, i32
  }
  func.func @transform_7(%arg0: i32) -> (i32, i32) {
    %c0_i32 = arith.constant 0 : i32
    %c0_i32_0 = arith.constant 0 : i32
    %c0_i32_1 = arith.constant 0 : i32
    return %c0_i32, %c0_i32_0 : i32, i32
  }
  func.func @transform_8(%arg0: i32) -> (i32, i32) {
    %c0_i32 = arith.constant 0 : i32
    %c0_i32_0 = arith.constant 0 : i32
    return %arg0, %c0_i32 : i32, i32
  }
}

module attributes {stable_mosaic.version = 11 : i64} {
  func.func @_coupling_kernel(%arg0: i32, %arg1: memref<8x128xf32, #tpu.memory_space<vmem>>, %arg2: memref<8x128xf32, #tpu.memory_space<vmem>>, %arg3: memref<128x128xf32, #tpu.memory_space<vmem>>, %arg4: memref<1x128xf32, #tpu.memory_space<vmem>>, %arg5: memref<2x128x128xf32, #tpu.memory_space<vmem>>, %arg6: memref<2x1x128xf32, #tpu.memory_space<vmem>>, %arg7: memref<128x128xf32, #tpu.memory_space<vmem>>, %arg8: memref<1x128xf32, #tpu.memory_space<vmem>>, %arg9: memref<8x128xf32, #tpu.memory_space<vmem>>) attributes {dimension_semantics = [#tpu.dimension_semantics<parallel>], iteration_bounds = array<i64: 1>, scalar_prefetch = 0 : i64, scratch_operands = 0 : i64, tpu.core_type = #tpu.core_type<tc>, window_params = [{transform_indices = @transform_0, window_bounds = array<i64: 8, 128>}, {transform_indices = @transform_1, window_bounds = array<i64: 8, 128>}, {pipeline_mode = #tpu.pipeline_mode<synchronous>, transform_indices = @transform_2, window_bounds = array<i64: 128, 128>}, {pipeline_mode = #tpu.pipeline_mode<synchronous>, transform_indices = @transform_3, window_bounds = array<i64: 1, 128>}, {pipeline_mode = #tpu.pipeline_mode<synchronous>, transform_indices = @transform_4, window_bounds = array<i64: 2, 128, 128>}, {pipeline_mode = #tpu.pipeline_mode<synchronous>, transform_indices = @transform_5, window_bounds = array<i64: 2, 1, 128>}, {pipeline_mode = #tpu.pipeline_mode<synchronous>, transform_indices = @transform_6, window_bounds = array<i64: 128, 128>}, {pipeline_mode = #tpu.pipeline_mode<synchronous>, transform_indices = @transform_7, window_bounds = array<i64: 1, 128>}, {transform_indices = @transform_8, window_bounds = array<i64: 8, 128>}]} {
    %c0 = arith.constant 0 : index
    %c0_0 = arith.constant 0 : index
    %0 = vector.load %arg1[%c0, %c0_0] : memref<8x128xf32, #tpu.memory_space<vmem>>, vector<8x128xf32>
    %c0_1 = arith.constant 0 : index
    %c0_2 = arith.constant 0 : index
    %1 = vector.load %arg3[%c0_1, %c0_2] : memref<128x128xf32, #tpu.memory_space<vmem>>, vector<128x128xf32>
    %cst = arith.constant dense<0.000000e+00> : vector<8x128xf32>
    %2 = tpu.matmul %0, %1, %cst {dimension_numbers = #tpu.dot_dimension_numbers<[1], [0], [0], [1], [0, 0, 1, 1], [], []>} : vector<8x128xf32>, vector<128x128xf32>, vector<8x128xf32> -> vector<8x128xf32>
    %c0_3 = arith.constant 0 : index
    %c0_4 = arith.constant 0 : index
    %3 = vector.load %arg4[%c0_3, %c0_4] : memref<1x128xf32, #tpu.memory_space<vmem>>, vector<1x128xf32>
    %4 = vector.broadcast %3 : vector<1x128xf32> to vector<8x128xf32>
    %5 = arith.addf %2, %4 : vector<8x128xf32>
    %cst_5 = arith.constant 0.000000e+00 : f32
    %6 = vector.broadcast %cst_5 : f32 to vector<8x128xf32>
    %7 = arith.maximumf %5, %6 : vector<8x128xf32>
    %c0_6 = arith.constant 0 : index
    %c0_7 = arith.constant 0 : index
    %c0_8 = arith.constant 0 : index
    %8 = vector.load %arg5[%c0_6, %c0_7, %c0_8] : memref<2x128x128xf32, #tpu.memory_space<vmem>>, vector<1x128x128xf32>
    %9 = vector.shape_cast %8 : vector<1x128x128xf32> to vector<128x128xf32>
    %cst_9 = arith.constant dense<0.000000e+00> : vector<8x128xf32>
    %10 = tpu.matmul %7, %9, %cst_9 {dimension_numbers = #tpu.dot_dimension_numbers<[1], [0], [0], [1], [0, 0, 1, 1], [], []>} : vector<8x128xf32>, vector<128x128xf32>, vector<8x128xf32> -> vector<8x128xf32>
    %c0_10 = arith.constant 0 : index
    %c0_11 = arith.constant 0 : index
    %c0_12 = arith.constant 0 : index
    %11 = vector.load %arg6[%c0_10, %c0_11, %c0_12] : memref<2x1x128xf32, #tpu.memory_space<vmem>>, vector<1x1x128xf32>
    %12 = vector.shape_cast %11 : vector<1x1x128xf32> to vector<1x128xf32>
    %13 = vector.broadcast %12 : vector<1x128xf32> to vector<8x128xf32>
    %14 = arith.addf %10, %13 : vector<8x128xf32>
    %cst_13 = arith.constant 0.000000e+00 : f32
    %15 = vector.broadcast %cst_13 : f32 to vector<8x128xf32>
    %16 = arith.maximumf %14, %15 : vector<8x128xf32>
    %c1 = arith.constant 1 : index
    %c0_14 = arith.constant 0 : index
    %c0_15 = arith.constant 0 : index
    %17 = vector.load %arg5[%c1, %c0_14, %c0_15] : memref<2x128x128xf32, #tpu.memory_space<vmem>>, vector<1x128x128xf32>
    %18 = vector.shape_cast %17 : vector<1x128x128xf32> to vector<128x128xf32>
    %cst_16 = arith.constant dense<0.000000e+00> : vector<8x128xf32>
    %19 = tpu.matmul %16, %18, %cst_16 {dimension_numbers = #tpu.dot_dimension_numbers<[1], [0], [0], [1], [0, 0, 1, 1], [], []>} : vector<8x128xf32>, vector<128x128xf32>, vector<8x128xf32> -> vector<8x128xf32>
    %c1_17 = arith.constant 1 : index
    %c0_18 = arith.constant 0 : index
    %c0_19 = arith.constant 0 : index
    %20 = vector.load %arg6[%c1_17, %c0_18, %c0_19] : memref<2x1x128xf32, #tpu.memory_space<vmem>>, vector<1x1x128xf32>
    %21 = vector.shape_cast %20 : vector<1x1x128xf32> to vector<1x128xf32>
    %22 = vector.broadcast %21 : vector<1x128xf32> to vector<8x128xf32>
    %23 = arith.addf %19, %22 : vector<8x128xf32>
    %cst_20 = arith.constant 0.000000e+00 : f32
    %24 = vector.broadcast %cst_20 : f32 to vector<8x128xf32>
    %25 = arith.maximumf %23, %24 : vector<8x128xf32>
    %c0_21 = arith.constant 0 : index
    %c0_22 = arith.constant 0 : index
    %26 = vector.load %arg7[%c0_21, %c0_22] : memref<128x128xf32, #tpu.memory_space<vmem>>, vector<128x128xf32>
    %cst_23 = arith.constant dense<0.000000e+00> : vector<8x128xf32>
    %27 = tpu.matmul %25, %26, %cst_23 {dimension_numbers = #tpu.dot_dimension_numbers<[1], [0], [0], [1], [0, 0, 1, 1], [], []>} : vector<8x128xf32>, vector<128x128xf32>, vector<8x128xf32> -> vector<8x128xf32>
    %c0_24 = arith.constant 0 : index
    %c0_25 = arith.constant 0 : index
    %28 = vector.load %arg8[%c0_24, %c0_25] : memref<1x128xf32, #tpu.memory_space<vmem>>, vector<1x128xf32>
    %29 = vector.broadcast %28 : vector<1x128xf32> to vector<8x128xf32>
    %30 = arith.addf %27, %29 : vector<8x128xf32>
    %c0_26 = arith.constant 0 : index
    %c0_27 = arith.constant 0 : index
    %31 = vector.load %arg2[%c0_26, %c0_27] : memref<8x128xf32, #tpu.memory_space<vmem>>, vector<8x128xf32>
    %32 = arith.addf %31, %30 : vector<8x128xf32>
    %c0_28 = arith.constant 0 : index
    %c0_29 = arith.constant 0 : index
    %33 = vector.load %arg9[%c0_28, %c0_29] : memref<8x128xf32, #tpu.memory_space<vmem>>, vector<8x128xf32>
    tpu.vector_store %arg9[%c0_28, %c0_29], %32 {strides = array<i32>} : memref<8x128xf32, #tpu.memory_space<vmem>>, vector<8x128xf32>,
    return
  }
  func.func @transform_0(%arg0: i32) -> (i32, i32) {
    %c0_i32 = arith.constant 0 : i32
    %c0_i32_0 = arith.constant 0 : i32
    return %arg0, %c0_i32 : i32, i32
  }
  func.func @transform_1(%arg0: i32) -> (i32, i32) {
    %c0_i32 = arith.constant 0 : i32
    %c0_i32_0 = arith.constant 0 : i32
    return %arg0, %c0_i32 : i32, i32
  }
  func.func @transform_2(%arg0: i32) -> (i32, i32) {
    %c0_i32 = arith.constant 0 : i32
    %c0_i32_0 = arith.constant 0 : i32
    %c0_i32_1 = arith.constant 0 : i32
    return %c0_i32, %c0_i32_0 : i32, i32
  }
  func.func @transform_3(%arg0: i32) -> (i32, i32) {
    %c0_i32 = arith.constant 0 : i32
    %c0_i32_0 = arith.constant 0 : i32
    %c0_i32_1 = arith.constant 0 : i32
    return %c0_i32, %c0_i32_0 : i32, i32
  }
  func.func @transform_4(%arg0: i32) -> (i32, i32, i32) {
    %c0_i32 = arith.constant 0 : i32
    %c0_i32_0 = arith.constant 0 : i32
    %c0_i32_1 = arith.constant 0 : i32
    %c0_i32_2 = arith.constant 0 : i32
    return %c0_i32, %c0_i32_0, %c0_i32_1 : i32, i32, i32
  }
  func.func @transform_5(%arg0: i32) -> (i32, i32, i32) {
    %c0_i32 = arith.constant 0 : i32
    %c0_i32_0 = arith.constant 0 : i32
    %c0_i32_1 = arith.constant 0 : i32
    %c0_i32_2 = arith.constant 0 : i32
    return %c0_i32, %c0_i32_0, %c0_i32_1 : i32, i32, i32
  }
  func.func @transform_6(%arg0: i32) -> (i32, i32) {
    %c0_i32 = arith.constant 0 : i32
    %c0_i32_0 = arith.constant 0 : i32
    %c0_i32_1 = arith.constant 0 : i32
    return %c0_i32, %c0_i32_0 : i32, i32
  }
  func.func @transform_7(%arg0: i32) -> (i32, i32) {
    %c0_i32 = arith.constant 0 : i32
    %c0_i32_0 = arith.constant 0 : i32
    %c0_i32_1 = arith.constant 0 : i32
    return %c0_i32, %c0_i32_0 : i32, i32
  }
  func.func @transform_8(%arg0: i32) -> (i32, i32) {
    %c0_i32 = arith.constant 0 : i32
    %c0_i32_0 = arith.constant 0 : i32
    return %arg0, %c0_i32 : i32, i32
  }
}

</mosaic_0001>

<llo_original>
// kernel: tpu_custom_call.1
$region0: #{tpu_custom_call.1}
  #allocation0 [shape = 'u32[]', space=smem, size = 0x4, offset = 0x4, fixed_abs, tag = 'smem constant byte address 0x4 - core index']
  #allocation1 [shape = 'u32[72,128]{1,0:T(1,128)}', space=vmem, size = 0x9000, scoped, tag = 'internal scratch']
  %s0 = inlined_call_operand.vmem [shape: f32[8,128], index: 0, kind: input, shape index: {}]
  %s1 = inlined_call_operand.hbm [shape: f32[8,128], index: 1, kind: input, shape index: {}, may-alias: {1,8}]
  %s2 = inlined_call_operand.hbm [shape: f32[128,128], index: 2, kind: input, shape index: {}]
  %s3 = inlined_call_operand.vmem [shape: f32[1,128], index: 3, kind: input, shape index: {}]
  %s4 = inlined_call_operand.hbm [shape: f32[2,128,128], index: 4, kind: input, shape index: {}]
  %s5 = inlined_call_operand.vmem [shape: f32[2,1,128], index: 5, kind: input, shape index: {}]
  %s6 = inlined_call_operand.hbm [shape: f32[128,128], index: 6, kind: input, shape index: {}]
  %s7 = inlined_call_operand.vmem [shape: f32[1,128], index: 7, kind: input, shape index: {}]
  %s8 = inlined_call_operand.hbm [shape: f32[8,128], index: 8, kind: output, shape index: {}, may-alias: {1,8}]
  %s9 = sld [smem:[#allocation0]]
  $region58: #{tpu_custom_call.1} parent=0
    _
  %s11 = ssub.s32 1, %s9
  %s12 = scalar_select 0, %s11, %s9
  $region1: #{tpu_custom_call.1} parent=0
    #allocation2 [shape = 'u8[4096]{0}', space=vmem, size = 0x1000, scoped, tag = 'input window, operand 1, single buffered']
    #allocation3 [shape = 's32[1]{0}', space=sflag, size = 0x4, scoped, tag = 'scoped memory for tpu_custom_call.1']
    #allocation4 [shape = 's32[1]{0}', space=sflag, size = 0x4, scoped, tag = 'scoped memory for tpu_custom_call.1']
    #allocation5 [shape = 'u8[65536]{0}', space=vmem, size = 0x10000, scoped, tag = 'input window, operand 2, single buffered']
    #allocation6 [shape = 's32[1]{0}', space=sflag, size = 0x4, scoped, tag = 'scoped memory for tpu_custom_call.1']
    #allocation7 [shape = 'u8[131072]{0}', space=vmem, size = 0x20000, scoped, tag = 'input window, operand 4, single buffered']
    #allocation8 [shape = 'u8[65536]{0}', space=vmem, size = 0x10000, scoped, tag = 'input window, operand 6, single buffered']
    #allocation9 [shape = 's32[1]{0}', space=sflag, size = 0x4, scoped, tag = 'scoped memory for tpu_custom_call.1']
    #allocation10 [shape = 'u8[4096]{0}', space=vmem, size = 0x1000, scoped, tag = 'output window, operand 0, single buffered']
    %13 = vsyncpa [#allocation3], 0
    %14 = vsyncpa [#allocation6], 0
    %15 = vsyncpa [#allocation9], 0
    %16 = vsyncpa [#allocation4], 0
    // Predicated region
    $region2: #{tpu_custom_call.1} parent=1 // pred_check
      _
    $region3: #{tpu_custom_call.1} parent=1 // pred_check_branch
      %18 = sbr.rel (0) target = $region5
    $region4: #{tpu_custom_call.1} parent=1 // pred_region
      _
    $region5: #{tpu_custom_call.1} parent=1 // pred_fallthru
      _
    // Predicated region
    $region6: #{tpu_custom_call.1} parent=1 // pred_check
      _
    $region7: #{tpu_custom_call.1} parent=1 // pred_check_branch
      %20 = sbr.rel (0) target = $region9
    $region8: #{tpu_custom_call.1} parent=1 // pred_region
      %22 = vsyncadd [#allocation3], 0
      %s24 = sshll.u32 %s1, 4
      %s25 = int_to_ptr.hbm [resolvable:$true] %s24
      %s26 = sshll.u32 [#allocation2], 4
      %s27 = int_to_ptr.vmem [resolvable:$true] %s26
      %29 = dma.hbm_to_vmem [thread:$0]  %s25, 128, %s27, [#allocation3]
    $region9: #{tpu_custom_call.1} parent=1 // pred_fallthru
      _
    // Predicated region
    $region10: #{tpu_custom_call.1} parent=1 // pred_check
      _
    $region11: #{tpu_custom_call.1} parent=1 // pred_check_branch
      %31 = sbr.rel (0) target = $region13
    $region12: #{tpu_custom_call.1} parent=1 // pred_region
      %33 = vsyncadd [#allocation6], 0
      %s34 = sshll.u32 %s2, 4
      %s35 = int_to_ptr.hbm [resolvable:$true] %s34
      %s36 = sshll.u32 [#allocation5], 4
      %s37 = int_to_ptr.vmem [resolvable:$true] %s36
      %42 = dma.hbm_to_vmem [thread:$0]  %s35, 2048, %s37, [#allocation6], 128, 128, 8
    $region13: #{tpu_custom_call.1} parent=1 // pred_fallthru
      _
    // Predicated region
    $region14: #{tpu_custom_call.1} parent=1 // pred_check
      _
    $region15: #{tpu_custom_call.1} parent=1 // pred_check_branch
      %44 = sbr.rel (0) target = $region17
    $region16: #{tpu_custom_call.1} parent=1 // pred_region
      _
    $region17: #{tpu_custom_call.1} parent=1 // pred_fallthru
      _
    // Predicated region
    $region18: #{tpu_custom_call.1} parent=1 // pred_check
      _
    $region19: #{tpu_custom_call.1} parent=1 // pred_check_branch
      %46 = sbr.rel (0) target = $region21
    $region20: #{tpu_custom_call.1} parent=1 // pred_region
      %48 = vsyncadd [#allocation6], 0
      %s49 = sshll.u32 %s4, 4
      %s50 = int_to_ptr.hbm [resolvable:$true] %s49
      %s51 = sshll.u32 [#allocation7], 4
      %s52 = int_to_ptr.vmem [resolvable:$true] %s51
      %57 = dma.hbm_to_vmem [thread:$0]  %s50, 4096, %s52, [#allocation6], 128, 128, 8
    $region21: #{tpu_custom_call.1} parent=1 // pred_fallthru
      _
    // Predicated region
    $region22: #{tpu_custom_call.1} parent=1 // pred_check
      _
    $region23: #{tpu_custom_call.1} parent=1 // pred_check_branch
      %59 = sbr.rel (0) target = $region25
    $region24: #{tpu_custom_call.1} parent=1 // pred_region
      _
    $region25: #{tpu_custom_call.1} parent=1 // pred_fallthru
      _
    // Predicated region
    $region26: #{tpu_custom_call.1} parent=1 // pred_check
      _
    $region27: #{tpu_custom_call.1} parent=1 // pred_check_branch
      %61 = sbr.rel (0) target = $region29
    $region28: #{tpu_custom_call.1} parent=1 // pred_region
      %63 = vsyncadd [#allocation9], 0
      %s64 = sshll.u32 %s6, 4
      %s65 = int_to_ptr.hbm [resolvable:$true] %s64
      %s66 = sshll.u32 [#allocation8], 4
      %s67 = int_to_ptr.vmem [resolvable:$true] %s66
      %72 = dma.hbm_to_vmem [thread:$0]  %s65, 2048, %s67, [#allocation9], 128, 128, 8
    $region29: #{tpu_custom_call.1} parent=1 // pred_fallthru
      _
    // Predicated region
    $region30: #{tpu_custom_call.1} parent=1 // pred_check
      _
    $region31: #{tpu_custom_call.1} parent=1 // pred_check_branch
      %74 = sbr.rel (0) target = $region33
    $region32: #{tpu_custom_call.1} parent=1 // pred_region
      _
    $region33: #{tpu_custom_call.1} parent=1 // pred_fallthru
      _
    // Predicated region
    $region34: #{tpu_custom_call.1} parent=1 // pred_check
      _
    $region35: #{tpu_custom_call.1} parent=1 // pred_check_branch
      %76 = sbr.rel (0) target = $region37
    $region36: #{tpu_custom_call.1} parent=1 // pred_region
      %78 = dma.done [#allocation3], 128
    $region37: #{tpu_custom_call.1} parent=1 // pred_fallthru
      _
    // Predicated region
    $region38: #{tpu_custom_call.1} parent=1 // pred_check
      _
    $region39: #{tpu_custom_call.1} parent=1 // pred_check_branch
      %80 = sbr.rel (0) target = $region41
    $region40: #{tpu_custom_call.1} parent=1 // pred_region
      %82 = dma.done [#allocation6], 2048
    $region41: #{tpu_custom_call.1} parent=1 // pred_fallthru
      _
    // Predicated region
    $region42: #{tpu_custom_call.1} parent=1 // pred_check
      _
    $region43: #{tpu_custom_call.1} parent=1 // pred_check_branch
      %84 = sbr.rel (0) target = $region45
    $region44: #{tpu_custom_call.1} parent=1 // pred_region
      %86 = dma.done [#allocation6], 4096
    $region45: #{tpu_custom_call.1} parent=1 // pred_fallthru
      _
    // Predicated region
    $region46: #{tpu_custom_call.1} parent=1 // pred_check
      _
    $region47: #{tpu_custom_call.1} parent=1 // pred_check_branch
      %88 = sbr.rel (0) target = $region49
    $region48: #{tpu_custom_call.1} parent=1 // pred_region
      %90 = dma.done [#allocation9], 2048
    $region49: #{tpu_custom_call.1} parent=1 // pred_fallthru
      _
    %v91 = vld [vmem:[%s0] sm:$0xff]
    %v92 = vld [vmem:[#allocation5] sm:$0xff]
    %v93 = vld [vmem:[#allocation5 + $0x8] sm:$0xff]
    %v94 = vld [vmem:[#allocation5 + $0x10] sm:$0xff]
    %v95 = vld [vmem:[#allocation5 + $0x18] sm:$0xff]
    %v96 = vld [vmem:[#allocation5 + $0x20] sm:$0xff]
    %v97 = vld [vmem:[#allocation5 + $0x28] sm:$0xff]
    %v98 = vld [vmem:[#allocation5 + $0x30] sm:$0xff]
    %v99 = vld [vmem:[#allocation5 + $0x38] sm:$0xff]
    %v100 = vld [vmem:[#allocation5 + $0x40] sm:$0xff]
    %v101 = vld [vmem:[#allocation5 + $0x48] sm:$0xff]
    %v102 = vld [vmem:[#allocation5 + $0x50] sm:$0xff]
    %v103 = vld [vmem:[#allocation5 + $0x58] sm:$0xff]
    %v104 = vld [vmem:[#allocation5 + $0x60] sm:$0xff]
    %v105 = vld [vmem:[#allocation5 + $0x68] sm:$0xff]
    %v106 = vld [vmem:[#allocation5 + $0x70] sm:$0xff]
    %v107 = vld [vmem:[#allocation5 + $0x78] sm:$0xff]
    %v108 = vld [vmem:[%s3] sm:$0x1]
    %v110 = vperm.slane %v108, 0
    %112 = vmatpush.msra.mxu0 %v107
    %113 = vmatpush.msra.mxu0 %v106
    %114 = vmatpush.msra.mxu0 %v105
    %115 = vmatpush.msra.mxu0 %v104
    %116 = vmatpush.msra.mxu0 %v103
    %117 = vmatpush.msra.mxu0 %v102
    %118 = vmatpush.msra.mxu0 %v101
    %119 = vmatpush.msra.mxu0 %v100
    %120 = vmatpush.msra.mxu0 %v99
    %121 = vmatpush.msra.mxu0 %v98
    %122 = vmatpush.msra.mxu0 %v97
    %123 = vmatpush.msra.mxu0 %v96
    %124 = vmatpush.msra.mxu0 %v95
    %125 = vmatpush.msra.mxu0 %v94
    %126 = vmatpush.msra.mxu0 %v93
    %127 = vmatpush.msra.mxu0 %v92
    %128 = vmatmul.f32.gmra.mxu0 %v91
    %v129 = vpop.f32.mrf.mxu0
    %v130 = vadd.f32 %v110, %v129
    %131 = vdwg.mxu0
    %v132 = vmax.f32 %v130, 0.0
    %v133 = vld [vmem:[#allocation7] sm:$0xff]
    %v134 = vld [vmem:[#allocation7 + $0x8] sm:$0xff]
    %v135 = vld [vmem:[#allocation7 + $0x10] sm:$0xff]
    %v136 = vld [vmem:[#allocation7 + $0x18] sm:$0xff]
    %v137 = vld [vmem:[#allocation7 + $0x20] sm:$0xff]
    %v138 = vld [vmem:[#allocation7 + $0x28] sm:$0xff]
    %v139 = vld [vmem:[#allocation7 + $0x30] sm:$0xff]
    %v140 = vld [vmem:[#allocation7 + $0x38] sm:$0xff]
    %v141 = vld [vmem:[#allocation7 + $0x40] sm:$0xff]
    %v142 = vld [vmem:[#allocation7 + $0x48] sm:$0xff]
    %v143 = vld [vmem:[#allocation7 + $0x50] sm:$0xff]
    %v144 = vld [vmem:[#allocation7 + $0x58] sm:$0xff]
    %v145 = vld [vmem:[#allocation7 + $0x60] sm:$0xff]
    %v146 = vld [vmem:[#allocation7 + $0x68] sm:$0xff]
    %v147 = vld [vmem:[#allocation7 + $0x70] sm:$0xff]
    %v148 = vld [vmem:[#allocation7 + $0x78] sm:$0xff]
    %v149 = vld [vmem:[%s5] sm:$0x1]
    %v151 = vperm.slane %v149, 0
    %153 = vmatpush.msra.mxu0 %v148
    %154 = vmatpush.msra.mxu0 %v147
    %155 = vmatpush.msra.mxu0 %v146
    %156 = vmatpush.msra.mxu0 %v145
    %157 = vmatpush.msra.mxu0 %v144
    %158 = vmatpush.msra.mxu0 %v143
    %159 = vmatpush.msra.mxu0 %v142
    %160 = vmatpush.msra.mxu0 %v141
    %161 = vmatpush.msra.mxu0 %v140
    %162 = vmatpush.msra.mxu0 %v139
    %163 = vmatpush.msra.mxu0 %v138
    %164 = vmatpush.msra.mxu0 %v137
    %165 = vmatpush.msra.mxu0 %v136
    %166 = vmatpush.msra.mxu0 %v135
    %167 = vmatpush.msra.mxu0 %v134
    %168 = vmatpush.msra.mxu0 %v133
    %169 = vmatmul.f32.gmra.mxu0 %v132
    %v170 = vpop.f32.mrf.mxu0
    %v171 = vadd.f32 %v151, %v170
    %172 = vdwg.mxu0
    %v173 = vmax.f32 %v171, 0.0
    %s174 = scalar_lea.vmem [#allocation7], 128
    %v175 = vld [vmem:[%s174] sm:$0xff]
    %v176 = vld [vmem:[%s174 + $0x8] sm:$0xff]
    %v177 = vld [vmem:[%s174 + $0x10] sm:$0xff]
    %v178 = vld [vmem:[%s174 + $0x18] sm:$0xff]
    %v179 = vld [vmem:[%s174 + $0x20] sm:$0xff]
    %v180 = vld [vmem:[%s174 + $0x28] sm:$0xff]
    %v181 = vld [vmem:[%s174 + $0x30] sm:$0xff]
    %v182 = vld [vmem:[%s174 + $0x38] sm:$0xff]
    %v183 = vld [vmem:[%s174 + $0x40] sm:$0xff]
    %v184 = vld [vmem:[%s174 + $0x48] sm:$0xff]
    %v185 = vld [vmem:[%s174 + $0x50] sm:$0xff]
    %v186 = vld [vmem:[%s174 + $0x58] sm:$0xff]
    %v187 = vld [vmem:[%s174 + $0x60] sm:$0xff]
    %v188 = vld [vmem:[%s174 + $0x68] sm:$0xff]
    %v189 = vld [vmem:[%s174 + $0x70] sm:$0xff]
    %v190 = vld [vmem:[%s174 + $0x78] sm:$0xff]
    %s191 = scalar_lea.vmem %s5, 1
    %v192 = vld [vmem:[%s191] sm:$0x1]
    %v194 = vperm.slane %v192, 0
    %196 = vmatpush.msra.mxu0 %v190
    %197 = vmatpush.msra.mxu0 %v189
    %198 = vmatpush.msra.mxu0 %v188
    %199 = vmatpush.msra.mxu0 %v187
    %200 = vmatpush.msra.mxu0 %v186
    %201 = vmatpush.msra.mxu0 %v185
    %202 = vmatpush.msra.mxu0 %v184
    %203 = vmatpush.msra.mxu0 %v183
    %204 = vmatpush.msra.mxu0 %v182
    %205 = vmatpush.msra.mxu0 %v181
    %206 = vmatpush.msra.mxu0 %v180
    %207 = vmatpush.msra.mxu0 %v179
    %208 = vmatpush.msra.mxu0 %v178
    %209 = vmatpush.msra.mxu0 %v177
    %210 = vmatpush.msra.mxu0 %v176
    %211 = vmatpush.msra.mxu0 %v175
    %212 = vmatmul.f32.gmra.mxu0 %v173
    %v213 = vpop.f32.mrf.mxu0
    %v214 = vadd.f32 %v194, %v213
    %215 = vdwg.mxu0
    %v216 = vmax.f32 %v214, 0.0
    %v217 = vld [vmem:[#allocation8] sm:$0xff]
    %v218 = vld [vmem:[#allocation8 + $0x8] sm:$0xff]
    %v219 = vld [vmem:[#allocation8 + $0x10] sm:$0xff]
    %v220 = vld [vmem:[#allocation8 + $0x18] sm:$0xff]
    %v221 = vld [vmem:[#allocation8 + $0x20] sm:$0xff]
    %v222 = vld [vmem:[#allocation8 + $0x28] sm:$0xff]
    %v223 = vld [vmem:[#allocation8 + $0x30] sm:$0xff]
    %v224 = vld [vmem:[#allocation8 + $0x38] sm:$0xff]
    %v225 = vld [vmem:[#allocation8 + $0x40] sm:$0xff]
    %v226 = vld [vmem:[#allocation8 + $0x48] sm:$0xff]
    %v227 = vld [vmem:[#allocation8 + $0x50] sm:$0xff]
    %v228 = vld [vmem:[#allocation8 + $0x58] sm:$0xff]
    %v229 = vld [vmem:[#allocation8 + $0x60] sm:$0xff]
    %v230 = vld [vmem:[#allocation8 + $0x68] sm:$0xff]
    %v231 = vld [vmem:[#allocation8 + $0x70] sm:$0xff]
    %v232 = vld [vmem:[#allocation8 + $0x78] sm:$0xff]
    %v233 = vld [vmem:[%s7] sm:$0x1]
    %v235 = vperm.slane %v233, 0
    %237 = vmatpush.msra.mxu0 %v232
    %238 = vmatpush.msra.mxu0 %v231
    %239 = vmatpush.msra.mxu0 %v230
    %240 = vmatpush.msra.mxu0 %v229
    %241 = vmatpush.msra.mxu0 %v228
    %242 = vmatpush.msra.mxu0 %v227
    %243 = vmatpush.msra.mxu0 %v226
    %244 = vmatpush.msra.mxu0 %v225
    %245 = vmatpush.msra.mxu0 %v224
    %246 = vmatpush.msra.mxu0 %v223
    %247 = vmatpush.msra.mxu0 %v222
    %248 = vmatpush.msra.mxu0 %v221
    %249 = vmatpush.msra.mxu0 %v220
    %250 = vmatpush.msra.mxu0 %v219
    %251 = vmatpush.msra.mxu0 %v218
    %252 = vmatpush.msra.mxu0 %v217
    %253 = vmatmul.f32.gmra.mxu0 %v216
    %v254 = vpop.f32.mrf.mxu0
    %v255 = vadd.f32 %v235, %v254
    %256 = vdwg.mxu0
    %v257 = vld [vmem:[#allocation2] sm:$0xff]
    %v258 = vadd.f32 %v257, %v255
    %259 = vst [vmem:[#allocation10] sm:$0xff] %v258
    // Predicated region
    $region50: #{tpu_custom_call.1} parent=1 // pred_check
      _
    $region51: #{tpu_custom_call.1} parent=1 // pred_check_branch
      %261 = sbr.rel (0) target = $region53
    $region52: #{tpu_custom_call.1} parent=1 // pred_region
      %263 = vsyncadd [#allocation4], 0
      %s265 = sshll.u32 [#allocation10], 4
      %s266 = int_to_ptr.vmem [resolvable:$true] %s265
      %s267 = sshll.u32 %s8, 4
      %s268 = int_to_ptr.hbm [resolvable:$true] %s267
      %270 = dma.vmem_to_hbm [thread:$0]  %s266, 128, %s268, [#allocation4]
    $region53: #{tpu_custom_call.1} parent=1 // pred_fallthru
      _
    // Predicated region
    $region54: #{tpu_custom_call.1} parent=1 // pred_check
      _
    $region55: #{tpu_custom_call.1} parent=1 // pred_check_branch
      %272 = sbr.rel (0) target = $region57
    $region56: #{tpu_custom_call.1} parent=1 // pred_region
      %274 = dma.done [#allocation4], 128
    $region57: #{tpu_custom_call.1} parent=1 // pred_fallthru
      _
    %275 = vsyncpa [#allocation3], 1
    %276 = vsyncpa [#allocation6], 1
    %277 = vsyncpa [#allocation9], 1
    %278 = vsyncpa [#allocation4], 1

// kernel: tpu_custom_call.1
$region0: #{tpu_custom_call.1}
  #allocation0 [shape = 'u32[]', space=smem, size = 0x4, offset = 0x4, fixed_abs, tag = 'smem constant byte address 0x4 - core index']
  #allocation1 [shape = 'u32[72,128]{1,0:T(1,128)}', space=vmem, size = 0x9000, scoped, tag = 'internal scratch']
  %s0 = inlined_call_operand.vmem [shape: f32[8,128], index: 0, kind: input, shape index: {}]
  %s1 = inlined_call_operand.hbm [shape: f32[8,128], index: 1, kind: input, shape index: {}, may-alias: {1,8}]
  %s2 = inlined_call_operand.hbm [shape: f32[128,128], index: 2, kind: input, shape index: {}]
  %s3 = inlined_call_operand.vmem [shape: f32[1,128], index: 3, kind: input, shape index: {}]
  %s4 = inlined_call_operand.hbm [shape: f32[2,128,128], index: 4, kind: input, shape index: {}]
  %s5 = inlined_call_operand.vmem [shape: f32[2,1,128], index: 5, kind: input, shape index: {}]
  %s6 = inlined_call_operand.hbm [shape: f32[128,128], index: 6, kind: input, shape index: {}]
  %s7 = inlined_call_operand.vmem [shape: f32[1,128], index: 7, kind: input, shape index: {}]
  %s8 = inlined_call_operand.hbm [shape: f32[8,128], index: 8, kind: output, shape index: {}, may-alias: {1,8}]
  %s9 = sld [smem:[#allocation0]]
  $region58: #{tpu_custom_call.1} parent=0
    _
  %s11 = ssub.s32 1, %s9
  %s12 = scalar_select 0, %s11, %s9
  $region1: #{tpu_custom_call.1} parent=0
    #allocation2 [shape = 'u8[4096]{0}', space=vmem, size = 0x1000, scoped, tag = 'input window, operand 1, single buffered']
    #allocation3 [shape = 's32[1]{0}', space=sflag, size = 0x4, scoped, tag = 'scoped memory for tpu_custom_call.1']
    #allocation4 [shape = 's32[1]{0}', space=sflag, size = 0x4, scoped, tag = 'scoped memory for tpu_custom_call.1']
    #allocation5 [shape = 'u8[65536]{0}', space=vmem, size = 0x10000, scoped, tag = 'input window, operand 2, single buffered']
    #allocation6 [shape = 's32[1]{0}', space=sflag, size = 0x4, scoped, tag = 'scoped memory for tpu_custom_call.1']
    #allocation7 [shape = 'u8[131072]{0}', space=vmem, size = 0x20000, scoped, tag = 'input window, operand 4, single buffered']
    #allocation8 [shape = 'u8[65536]{0}', space=vmem, size = 0x10000, scoped, tag = 'input window, operand 6, single buffered']
    #allocation9 [shape = 's32[1]{0}', space=sflag, size = 0x4, scoped, tag = 'scoped memory for tpu_custom_call.1']
    #allocation10 [shape = 'u8[4096]{0}', space=vmem, size = 0x1000, scoped, tag = 'output window, operand 0, single buffered']
    %13 = vsyncpa [#allocation3], 0
    %14 = vsyncpa [#allocation6], 0
    %15 = vsyncpa [#allocation9], 0
    %16 = vsyncpa [#allocation4], 0
    // Predicated region
    $region2: #{tpu_custom_call.1} parent=1 // pred_check
      _
    $region3: #{tpu_custom_call.1} parent=1 // pred_check_branch
      %18 = sbr.rel (0) target = $region5
    $region4: #{tpu_custom_call.1} parent=1 // pred_region
      _
    $region5: #{tpu_custom_call.1} parent=1 // pred_fallthru
      _
    // Predicated region
    $region6: #{tpu_custom_call.1} parent=1 // pred_check
      _
    $region7: #{tpu_custom_call.1} parent=1 // pred_check_branch
      %20 = sbr.rel (0) target = $region9
    $region8: #{tpu_custom_call.1} parent=1 // pred_region
      %22 = vsyncadd [#allocation3], 0
      %s24 = sshll.u32 %s1, 4
      %s25 = int_to_ptr.hbm [resolvable:$true] %s24
      %s26 = sshll.u32 [#allocation2], 4
      %s27 = int_to_ptr.vmem [resolvable:$true] %s26
      %29 = dma.hbm_to_vmem [thread:$0]  %s25, 128, %s27, [#allocation3]
    $region9: #{tpu_custom_call.1} parent=1 // pred_fallthru
      _
    // Predicated region
    $region10: #{tpu_custom_call.1} parent=1 // pred_check
      _
    $region11: #{tpu_custom_call.1} parent=1 // pred_check_branch
      %31 = sbr.rel (0) target = $region13
    $region12: #{tpu_custom_call.1} parent=1 // pred_region
      %33 = vsyncadd [#allocation6], 0
      %s34 = sshll.u32 %s2, 4
      %s35 = int_to_ptr.hbm [resolvable:$true] %s34
      %s36 = sshll.u32 [#allocation5], 4
      %s37 = int_to_ptr.vmem [resolvable:$true] %s36
      %42 = dma.hbm_to_vmem [thread:$0]  %s35, 2048, %s37, [#allocation6], 128, 128, 8
    $region13: #{tpu_custom_call.1} parent=1 // pred_fallthru
      _
    // Predicated region
    $region14: #{tpu_custom_call.1} parent=1 // pred_check
      _
    $region15: #{tpu_custom_call.1} parent=1 // pred_check_branch
      %44 = sbr.rel (0) target = $region17
    $region16: #{tpu_custom_call.1} parent=1 // pred_region
      _
    $region17: #{tpu_custom_call.1} parent=1 // pred_fallthru
      _
    // Predicated region
    $region18: #{tpu_custom_call.1} parent=1 // pred_check
      _
    $region19: #{tpu_custom_call.1} parent=1 // pred_check_branch
      %46 = sbr.rel (0) target = $region21
    $region20: #{tpu_custom_call.1} parent=1 // pred_region
      %48 = vsyncadd [#allocation6], 0
      %s49 = sshll.u32 %s4, 4
      %s50 = int_to_ptr.hbm [resolvable:$true] %s49
      %s51 = sshll.u32 [#allocation7], 4
      %s52 = int_to_ptr.vmem [resolvable:$true] %s51
      %57 = dma.hbm_to_vmem [thread:$0]  %s50, 4096, %s52, [#allocation6], 128, 128, 8
    $region21: #{tpu_custom_call.1} parent=1 // pred_fallthru
      _
    // Predicated region
    $region22: #{tpu_custom_call.1} parent=1 // pred_check
      _
    $region23: #{tpu_custom_call.1} parent=1 // pred_check_branch
      %59 = sbr.rel (0) target = $region25
    $region24: #{tpu_custom_call.1} parent=1 // pred_region
      _
    $region25: #{tpu_custom_call.1} parent=1 // pred_fallthru
      _
    // Predicated region
    $region26: #{tpu_custom_call.1} parent=1 // pred_check
      _
    $region27: #{tpu_custom_call.1} parent=1 // pred_check_branch
      %61 = sbr.rel (0) target = $region29
    $region28: #{tpu_custom_call.1} parent=1 // pred_region
      %63 = vsyncadd [#allocation9], 0
      %s64 = sshll.u32 %s6, 4
      %s65 = int_to_ptr.hbm [resolvable:$true] %s64
      %s66 = sshll.u32 [#allocation8], 4
      %s67 = int_to_ptr.vmem [resolvable:$true] %s66
      %72 = dma.hbm_to_vmem [thread:$0]  %s65, 2048, %s67, [#allocation9], 128, 128, 8
    $region29: #{tpu_custom_call.1} parent=1 // pred_fallthru
      _
    // Predicated region
    $region30: #{tpu_custom_call.1} parent=1 // pred_check
      _
    $region31: #{tpu_custom_call.1} parent=1 // pred_check_branch
      %74 = sbr.rel (0) target = $region33
    $region32: #{tpu_custom_call.1} parent=1 // pred_region
      _
    $region33: #{tpu_custom_call.1} parent=1 // pred_fallthru
      _
    // Predicated region
    $region34: #{tpu_custom_call.1} parent=1 // pred_check
      _
    $region35: #{tpu_custom_call.1} parent=1 // pred_check_branch
      %76 = sbr.rel (0) target = $region37
    $region36: #{tpu_custom_call.1} parent=1 // pred_region
      %78 = dma.done [#allocation3], 128
    $region37: #{tpu_custom_call.1} parent=1 // pred_fallthru
      _
    // Predicated region
    $region38: #{tpu_custom_call.1} parent=1 // pred_check
      _
    $region39: #{tpu_custom_call.1} parent=1 // pred_check_branch
      %80 = sbr.rel (0) target = $region41
    $region40: #{tpu_custom_call.1} parent=1 // pred_region
      %82 = dma.done [#allocation6], 2048
    $region41: #{tpu_custom_call.1} parent=1 // pred_fallthru
      _
    // Predicated region
    $region42: #{tpu_custom_call.1} parent=1 // pred_check
      _
    $region43: #{tpu_custom_call.1} parent=1 // pred_check_branch
      %84 = sbr.rel (0) target = $region45
    $region44: #{tpu_custom_call.1} parent=1 // pred_region
      %86 = dma.done [#allocation6], 4096
    $region45: #{tpu_custom_call.1} parent=1 // pred_fallthru
      _
    // Predicated region
    $region46: #{tpu_custom_call.1} parent=1 // pred_check
      _
    $region47: #{tpu_custom_call.1} parent=1 // pred_check_branch
      %88 = sbr.rel (0) target = $region49
    $region48: #{tpu_custom_call.1} parent=1 // pred_region
      %90 = dma.done [#allocation9], 2048
    $region49: #{tpu_custom_call.1} parent=1 // pred_fallthru
      _
    %v91 = vld [vmem:[%s0] sm:$0xff]
    %v92 = vld [vmem:[#allocation5] sm:$0xff]
    %v93 = vld [vmem:[#allocation5 + $0x8] sm:$0xff]
    %v94 = vld [vmem:[#allocation5 + $0x10] sm:$0xff]
    %v95 = vld [vmem:[#allocation5 + $0x18] sm:$0xff]
    %v96 = vld [vmem:[#allocation5 + $0x20] sm:$0xff]
    %v97 = vld [vmem:[#allocation5 + $0x28] sm:$0xff]
    %v98 = vld [vmem:[#allocation5 + $0x30] sm:$0xff]
    %v99 = vld [vmem:[#allocation5 + $0x38] sm:$0xff]
    %v100 = vld [vmem:[#allocation5 + $0x40] sm:$0xff]
    %v101 = vld [vmem:[#allocation5 + $0x48] sm:$0xff]
    %v102 = vld [vmem:[#allocation5 + $0x50] sm:$0xff]
    %v103 = vld [vmem:[#allocation5 + $0x58] sm:$0xff]
    %v104 = vld [vmem:[#allocation5 + $0x60] sm:$0xff]
    %v105 = vld [vmem:[#allocation5 + $0x68] sm:$0xff]
    %v106 = vld [vmem:[#allocation5 + $0x70] sm:$0xff]
    %v107 = vld [vmem:[#allocation5 + $0x78] sm:$0xff]
    %v108 = vld [vmem:[%s3] sm:$0x1]
    %v110 = vperm.slane %v108, 0
    %112 = vmatpush.msra.mxu0 %v107
    %113 = vmatpush.msra.mxu0 %v106
    %114 = vmatpush.msra.mxu0 %v105
    %115 = vmatpush.msra.mxu0 %v104
    %116 = vmatpush.msra.mxu0 %v103
    %117 = vmatpush.msra.mxu0 %v102
    %118 = vmatpush.msra.mxu0 %v101
    %119 = vmatpush.msra.mxu0 %v100
    %120 = vmatpush.msra.mxu0 %v99
    %121 = vmatpush.msra.mxu0 %v98
    %122 = vmatpush.msra.mxu0 %v97
    %123 = vmatpush.msra.mxu0 %v96
    %124 = vmatpush.msra.mxu0 %v95
    %125 = vmatpush.msra.mxu0 %v94
    %126 = vmatpush.msra.mxu0 %v93
    %127 = vmatpush.msra.mxu0 %v92
    %128 = vmatmul.f32.gmra.mxu0 %v91
    %v129 = vpop.f32.mrf.mxu0
    %v130 = vadd.f32 %v110, %v129
    %131 = vdwg.mxu0
    %v132 = vmax.f32 %v130, 0.0
    %v133 = vld [vmem:[#allocation7] sm:$0xff]
    %v134 = vld [vmem:[#allocation7 + $0x8] sm:$0xff]
    %v135 = vld [vmem:[#allocation7 + $0x10] sm:$0xff]
    %v136 = vld [vmem:[#allocation7 + $0x18] sm:$0xff]
    %v137 = vld [vmem:[#allocation7 + $0x20] sm:$0xff]
    %v138 = vld [vmem:[#allocation7 + $0x28] sm:$0xff]
    %v139 = vld [vmem:[#allocation7 + $0x30] sm:$0xff]
    %v140 = vld [vmem:[#allocation7 + $0x38] sm:$0xff]
    %v141 = vld [vmem:[#allocation7 + $0x40] sm:$0xff]
    %v142 = vld [vmem:[#allocation7 + $0x48] sm:$0xff]
    %v143 = vld [vmem:[#allocation7 + $0x50] sm:$0xff]
    %v144 = vld [vmem:[#allocation7 + $0x58] sm:$0xff]
    %v145 = vld [vmem:[#allocation7 + $0x60] sm:$0xff]
    %v146 = vld [vmem:[#allocation7 + $0x68] sm:$0xff]
    %v147 = vld [vmem:[#allocation7 + $0x70] sm:$0xff]
    %v148 = vld [vmem:[#allocation7 + $0x78] sm:$0xff]
    %v149 = vld [vmem:[%s5] sm:$0x1]
    %v151 = vperm.slane %v149, 0
    %153 = vmatpush.msra.mxu0 %v148
    %154 = vmatpush.msra.mxu0 %v147
    %155 = vmatpush.msra.mxu0 %v146
    %156 = vmatpush.msra.mxu0 %v145
    %157 = vmatpush.msra.mxu0 %v144
    %158 = vmatpush.msra.mxu0 %v143
    %159 = vmatpush.msra.mxu0 %v142
    %160 = vmatpush.msra.mxu0 %v141
    %161 = vmatpush.msra.mxu0 %v140
    %162 = vmatpush.msra.mxu0 %v139
    %163 = vmatpush.msra.mxu0 %v138
    %164 = vmatpush.msra.mxu0 %v137
    %165 = vmatpush.msra.mxu0 %v136
    %166 = vmatpush.msra.mxu0 %v135
    %167 = vmatpush.msra.mxu0 %v134
    %168 = vmatpush.msra.mxu0 %v133
    %169 = vmatmul.f32.gmra.mxu0 %v132
    %v170 = vpop.f32.mrf.mxu0
    %v171 = vadd.f32 %v151, %v170
    %172 = vdwg.mxu0
    %v173 = vmax.f32 %v171, 0.0
    %s174 = scalar_lea.vmem [#allocation7], 128
    %v175 = vld [vmem:[%s174] sm:$0xff]
    %v176 = vld [vmem:[%s174 + $0x8] sm:$0xff]
    %v177 = vld [vmem:[%s174 + $0x10] sm:$0xff]
    %v178 = vld [vmem:[%s174 + $0x18] sm:$0xff]
    %v179 = vld [vmem:[%s174 + $0x20] sm:$0xff]
    %v180 = vld [vmem:[%s174 + $0x28] sm:$0xff]
    %v181 = vld [vmem:[%s174 + $0x30] sm:$0xff]
    %v182 = vld [vmem:[%s174 + $0x38] sm:$0xff]
    %v183 = vld [vmem:[%s174 + $0x40] sm:$0xff]
    %v184 = vld [vmem:[%s174 + $0x48] sm:$0xff]
    %v185 = vld [vmem:[%s174 + $0x50] sm:$0xff]
    %v186 = vld [vmem:[%s174 + $0x58] sm:$0xff]
    %v187 = vld [vmem:[%s174 + $0x60] sm:$0xff]
    %v188 = vld [vmem:[%s174 + $0x68] sm:$0xff]
    %v189 = vld [vmem:[%s174 + $0x70] sm:$0xff]
    %v190 = vld [vmem:[%s174 + $0x78] sm:$0xff]
    %s191 = scalar_lea.vmem %s5, 1
    %v192 = vld [vmem:[%s191] sm:$0x1]
    %v194 = vperm.slane %v192, 0
    %196 = vmatpush.msra.mxu0 %v190
    %197 = vmatpush.msra.mxu0 %v189
    %198 = vmatpush.msra.mxu0 %v188
    %199 = vmatpush.msra.mxu0 %v187
    %200 = vmatpush.msra.mxu0 %v186
    %201 = vmatpush.msra.mxu0 %v185
    %202 = vmatpush.msra.mxu0 %v184
    %203 = vmatpush.msra.mxu0 %v183
    %204 = vmatpush.msra.mxu0 %v182
    %205 = vmatpush.msra.mxu0 %v181
    %206 = vmatpush.msra.mxu0 %v180
    %207 = vmatpush.msra.mxu0 %v179
    %208 = vmatpush.msra.mxu0 %v178
    %209 = vmatpush.msra.mxu0 %v177
    %210 = vmatpush.msra.mxu0 %v176
    %211 = vmatpush.msra.mxu0 %v175
    %212 = vmatmul.f32.gmra.mxu0 %v173
    %v213 = vpop.f32.mrf.mxu0
    %v214 = vadd.f32 %v194, %v213
    %215 = vdwg.mxu0
    %v216 = vmax.f32 %v214, 0.0
    %v217 = vld [vmem:[#allocation8] sm:$0xff]
    %v218 = vld [vmem:[#allocation8 + $0x8] sm:$0xff]
    %v219 = vld [vmem:[#allocation8 + $0x10] sm:$0xff]
    %v220 = vld [vmem:[#allocation8 + $0x18] sm:$0xff]
    %v221 = vld [vmem:[#allocation8 + $0x20] sm:$0xff]
    %v222 = vld [vmem:[#allocation8 + $0x28] sm:$0xff]
    %v223 = vld [vmem:[#allocation8 + $0x30] sm:$0xff]
    %v224 = vld [vmem:[#allocation8 + $0x38] sm:$0xff]
    %v225 = vld [vmem:[#allocation8 + $0x40] sm:$0xff]
    %v226 = vld [vmem:[#allocation8 + $0x48] sm:$0xff]
    %v227 = vld [vmem:[#allocation8 + $0x50] sm:$0xff]
    %v228 = vld [vmem:[#allocation8 + $0x58] sm:$0xff]
    %v229 = vld [vmem:[#allocation8 + $0x60] sm:$0xff]
    %v230 = vld [vmem:[#allocation8 + $0x68] sm:$0xff]
    %v231 = vld [vmem:[#allocation8 + $0x70] sm:$0xff]
    %v232 = vld [vmem:[#allocation8 + $0x78] sm:$0xff]
    %v233 = vld [vmem:[%s7] sm:$0x1]
    %v235 = vperm.slane %v233, 0
    %237 = vmatpush.msra.mxu0 %v232
    %238 = vmatpush.msra.mxu0 %v231
    %239 = vmatpush.msra.mxu0 %v230
    %240 = vmatpush.msra.mxu0 %v229
    %241 = vmatpush.msra.mxu0 %v228
    %242 = vmatpush.msra.mxu0 %v227
    %243 = vmatpush.msra.mxu0 %v226
    %244 = vmatpush.msra.mxu0 %v225
    %245 = vmatpush.msra.mxu0 %v224
    %246 = vmatpush.msra.mxu0 %v223
    %247 = vmatpush.msra.mxu0 %v222
    %248 = vmatpush.msra.mxu0 %v221
    %249 = vmatpush.msra.mxu0 %v220
    %250 = vmatpush.msra.mxu0 %v219
    %251 = vmatpush.msra.mxu0 %v218
    %252 = vmatpush.msra.mxu0 %v217
    %253 = vmatmul.f32.gmra.mxu0 %v216
    %v254 = vpop.f32.mrf.mxu0
    %v255 = vadd.f32 %v235, %v254
    %256 = vdwg.mxu0
    %v257 = vld [vmem:[#allocation2] sm:$0xff]
    %v258 = vadd.f32 %v257, %v255
    %259 = vst [vmem:[#allocation10] sm:$0xff] %v258
    // Predicated region
    $region50: #{tpu_custom_call.1} parent=1 // pred_check
      _
    $region51: #{tpu_custom_call.1} parent=1 // pred_check_branch
      %261 = sbr.rel (0) target = $region53
    $region52: #{tpu_custom_call.1} parent=1 // pred_region
      %263 = vsyncadd [#allocation4], 0
      %s265 = sshll.u32 [#allocation10], 4
      %s266 = int_to_ptr.vmem [resolvable:$true] %s265
      %s267 = sshll.u32 %s8, 4
      %s268 = int_to_ptr.hbm [resolvable:$true] %s267
      %270 = dma.vmem_to_hbm [thread:$0]  %s266, 128, %s268, [#allocation4]
    $region53: #{tpu_custom_call.1} parent=1 // pred_fallthru
      _
    // Predicated region
    $region54: #{tpu_custom_call.1} parent=1 // pred_check
      _
    $region55: #{tpu_custom_call.1} parent=1 // pred_check_branch
      %272 = sbr.rel (0) target = $region57
    $region56: #{tpu_custom_call.1} parent=1 // pred_region
      %274 = dma.done [#allocation4], 128
    $region57: #{tpu_custom_call.1} parent=1 // pred_fallthru
      _
    %275 = vsyncpa [#allocation3], 1
    %276 = vsyncpa [#allocation6], 1
    %277 = vsyncpa [#allocation9], 1
    %278 = vsyncpa [#allocation4], 1

</llo_original>
